<compile_context>
chip_gen: v6e
topology: v6e:2x2x1
jax: 0.10.0
libtpu: 0.0.40
codegen_flags: <defaults>
</compile_context>

<pallas_src>
import functools
import math

import jax
import jax.numpy as jnp
from jax.experimental import pallas as pl
from jax.experimental.pallas import tpu as pltpu


# murmur3 fmix32 constants as signed int32 bit patterns.
_M1 = 0x85EBCA6B - (1 << 32)
_M2 = 0xC2B2AE35 - (1 << 32)
_GOLD = 0x9E3779B9 - (1 << 32)


def _srl(x, n):
    """Logical right shift on int32 (lax wants matching shapes/dtypes)."""
    return jax.lax.shift_right_logical(x, jnp.full(x.shape, n, x.dtype))


def _mix32(x):
    """murmur3 fmix32 on int32 bit patterns (wraparound multiplies)."""
    x = x ^ _srl(x, 16)
    x = x * jnp.int32(_M1)
    x = x ^ _srl(x, 13)
    x = x * jnp.int32(_M2)
    x = x ^ _srl(x, 16)
    return x


def _pe_block(freq_ref, phase_ref, tile_rows):
    """Generate the pe tile (tile_rows, C) on the fly.

    Column c of the flattened (S, B*D) layout corresponds to feature d = c % D;
    freq[c] = div_term[d // 2], phase[c] = 0 (even d, sin) or pi/2 (odd d, cos):
        pe = sin(position * freq + phase)
    sin runs on the EUP, a VLIW slot that is idle in this memory-bound kernel.
    """
    c = freq_ref.shape[-1]
    rows = jax.lax.broadcasted_iota(jnp.int32, (tile_rows, c), 0)
    pos = (rows + pl.program_id(0) * tile_rows).astype(jnp.float32)
    return jnp.sin(pos * freq_ref[...] + phase_ref[...])          # f32


def _pe_add_kernel(x_ref, freq_ref, phase_ref, o_ref, *, tile_rows):
    pe = _pe_block(freq_ref, phase_ref, tile_rows).astype(x_ref.dtype)
    o_ref[...] = x_ref[...] + pe


def _pe_add_dropout_kernel(seed_ref, x_ref, freq_ref, phase_ref, o_ref, *,
                           tile_rows, threshold, scale):
    # TODO(synk): mask cannot bit-match torch's RNG stream; statistics/scaling match.
    y = x_ref[...] + _pe_block(freq_ref, phase_ref, tile_rows).astype(x_ref.dtype)

    # Portable counter-based hash: one distinct int32 counter per element,
    # mixed with the seed; keep iff hash >= signed threshold (P(keep) = 1 - p).
    shape = y.shape
    rows = jax.lax.broadcasted_iota(jnp.int32, shape, 0)
    cols = jax.lax.broadcasted_iota(jnp.int32, shape, 1)
    grow = rows + pl.program_id(0) * tile_rows
    idx = grow * jnp.int32(shape[-1]) + cols
    h = _mix32(idx ^ (seed_ref[0] * jnp.int32(_GOLD)))
    keep = h >= jnp.int32(threshold)
    o_ref[...] = jnp.where(keep, y * jnp.asarray(scale, y.dtype), jnp.zeros_like(y))


def make_positional_encoding(d_model: int, max_len: int = 5000, dtype=jnp.float32):
    """Reference pe table, identical to the PyTorch __init__ (minus batch dim)."""
    position = jnp.arange(max_len, dtype=jnp.float32)[:, None]
    div_term = jnp.exp(jnp.arange(0, d_model, 2, dtype=jnp.float32)
                       * (-math.log(10000.0) / d_model))
    ang = position * div_term
    pe = jnp.zeros((max_len, d_model), jnp.float32)
    pe = pe.at[:, 0::2].set(jnp.sin(ang))
    pe = pe.at[:, 1::2].set(jnp.cos(ang))
    return pe.astype(dtype)


def _pick_tile_rows(n_rows, row_bytes, target_bytes=4 << 20, min_block_bytes=512 << 10):
    """Rows per block: multiple-of-8 divisor of n_rows (or the full extent),
    ~target_bytes per block, preferring >=8 grid steps (pipelining + v7x
    dual-TC sharding) while blocks stay >= min_block_bytes."""
    divs = sorted({d for d in range(8, n_rows, 8) if n_rows % d == 0} | {n_rows})
    fit = [d for d in divs if d * row_bytes <= target_bytes]
    ts = fit[-1] if fit else divs[0]
    deep = [d for d in divs if n_rows // d >= 8 and d * row_bytes >= min_block_bytes]
    if deep:
        ts = min(ts, deep[-1])
    return ts   # TODO(synk): pad + pl.when-guard the tail tile for ragged n_rows


def positional_encoding_forward(x, *, p: float = 0.1, training: bool = False,
                                seed: int = 0, max_len: int = 5000,
                                tile_rows: int | None = None):
    """dropout(x + pe[:S]) with pe generated in-kernel.  x: [S, B, D]."""
    S, B, D = x.shape
    assert S <= max_len
    C = B * D
    xk = x.reshape(S, C)                          # free row-major reshape

    # Tiny per-column frequency / phase rows (a few KiB; computed once by XLA).
    d_idx = jnp.arange(D)
    freq_d = jnp.exp(((d_idx // 2) * 2).astype(jnp.float32)
                     * (-math.log(10000.0) / D))
    phase_d = jnp.where(d_idx % 2 == 1,
                        jnp.float32(math.pi / 2.0), jnp.float32(0.0))
    freq = jnp.tile(freq_d, B)[None, :]           # (1, C)
    phase = jnp.tile(phase_d, B)[None, :]         # (1, C)

    itemsize = jnp.dtype(x.dtype).itemsize
    use_dropout = bool(training and p > 0.0)
    # Per-row VMEM footprint: double-buffered x + out, plus ~8 B/elem of 32-bit
    # hash / mask temporaries for dropout (independent of x dtype; v5e-safe).
    row_bytes = C * (4 * itemsize + (8 if use_dropout else 0))
    ts = tile_rows if tile_rows is not None else _pick_tile_rows(S, row_bytes)
    assert S % ts == 0 and (ts % 8 == 0 or ts == S)
    grid = (S // ts,)

    out_shape = jax.ShapeDtypeStruct((S, C), x.dtype)
    cparams = pltpu.CompilerParams(
        dimension_semantics=("parallel",),        # megacore/v7x-shard the row-tile axis
        vmem_limit_bytes=32 * 1024 * 1024,
    )
    x_block = (ts, C)
    row_spec = (1, C)

    if use_dropout:
        assert 0.0 < p < 1.0
        threshold = min(int(round(p * 4294967296.0)), (1 << 32) - 1) - (1 << 31)
        kernel = functools.partial(_pe_add_dropout_kernel, tile_rows=ts,
                                   threshold=threshold, scale=1.0 / (1.0 - p))
        grid_spec = pltpu.PrefetchScalarGridSpec(
            num_scalar_prefetch=1, grid=grid,
            in_specs=[pl.BlockSpec(x_block, lambda i, s: (i, 0)),
                      pl.BlockSpec(row_spec, lambda i, s: (0, 0)),
                      pl.BlockSpec(row_spec, lambda i, s: (0, 0))],
            out_specs=pl.BlockSpec(x_block, lambda i, s: (i, 0)))
        out = pl.pallas_call(kernel, out_shape=out_shape, grid_spec=grid_spec,
                             compiler_params=cparams)(
            jnp.asarray([seed], dtype=jnp.int32), xk, freq, phase)
    else:
        kernel = functools.partial(_pe_add_kernel, tile_rows=ts)
        grid_spec = pltpu.PrefetchScalarGridSpec(
            num_scalar_prefetch=0, grid=grid,
            in_specs=[pl.BlockSpec(x_block, lambda i: (i, 0)),
                      pl.BlockSpec(row_spec, lambda i: (0, 0)),
                      pl.BlockSpec(row_spec, lambda i: (0, 0))],
            out_specs=pl.BlockSpec(x_block, lambda i: (i, 0)))
        out = pl.pallas_call(kernel, out_shape=out_shape, grid_spec=grid_spec,
                             compiler_params=cparams)(xk, freq, phase)

    return out.reshape(S, B, D)


if __name__ == "__main__":
    key = jax.random.PRNGKey(0)
    k1, k2 = jax.random.split(key)
    p = 0.1
    scale = 1.0 / (1.0 - p)

    # Case 1: small d_model (< 128) -> flattened rows still lane-dense enough.
    S1, B1, D1 = 8, 2, 32
    x1 = jax.random.normal(k1, (S1, B1, D1), dtype=jnp.float32)
    ref1 = x1 + make_positional_encoding(D1, max_len=64)[:S1][:, None, :]

    out1 = jax.block_until_ready(positional_encoding_forward(x1, p=p, training=False))
    assert out1.shape == (S1, B1, D1)
    assert jnp.allclose(out1, ref1, atol=1e-5, rtol=1e-5)

    tr1 = jax.block_until_ready(
        positional_encoding_forward(x1, p=p, training=True, seed=123))
    assert tr1.shape == (S1, B1, D1)
    assert bool(jnp.all(jnp.isfinite(tr1)))
    kept_err1 = jnp.where(tr1 != 0, jnp.abs(tr1 - ref1 * scale), 0.0)
    assert float(kept_err1.max()) < 1e-4          # kept elements == (x+pe)/(1-p)
    drop_frac1 = float(jnp.mean((tr1 == 0).astype(jnp.float32)))
    assert 0.01 < drop_frac1 < 0.5                # roughly p of the elements dropped

    # Case 2: d_model multiple of 128.
    S2, B2, D2 = 16, 2, 128
    x2 = jax.random.normal(k2, (S2, B2, D2), dtype=jnp.float32)
    ref2 = x2 + make_positional_encoding(D2, max_len=64)[:S2][:, None, :]

    out2 = jax.block_until_ready(positional_encoding_forward(x2, p=p, training=False))
    assert jnp.allclose(out2, ref2, atol=1e-5, rtol=1e-5)

    tr2 = jax.block_until_ready(
        positional_encoding_forward(x2, p=p, training=True, seed=7))
    kept_err2 = jnp.where(tr2 != 0, jnp.abs(tr2 - ref2 * scale), 0.0)
    assert float(kept_err2.max()) < 1e-4
    drop_frac2 = float(jnp.mean((tr2 == 0).astype(jnp.float32)))
    assert 0.01 < drop_frac2 < 0.5

    print("KERNEL_OK")
</pallas_src>

<mosaic_0001>
module attributes {stable_mosaic.version = 11 : i64} {
  func.func @_pe_add_kernel(%arg0: i32, %arg1: memref<8x64xf32, #tpu.memory_space<vmem>>, %arg2: memref<1x64xf32, #tpu.memory_space<vmem>>, %arg3: memref<1x64xf32, #tpu.memory_space<vmem>>, %arg4: memref<8x64xf32, #tpu.memory_space<vmem>>) attributes {dimension_semantics = [#tpu.dimension_semantics<parallel>], iteration_bounds = array<i64: 1>, scalar_prefetch = 0 : i64, scratch_operands = 0 : i64, tpu.core_type = #tpu.core_type<tc>, window_params = [{transform_indices = @transform_0, window_bounds = array<i64: 8, 64>}, {pipeline_mode = #tpu.pipeline_mode<synchronous>, transform_indices = @transform_1, window_bounds = array<i64: 1, 64>}, {pipeline_mode = #tpu.pipeline_mode<synchronous>, transform_indices = @transform_2, window_bounds = array<i64: 1, 64>}, {transform_indices = @transform_3, window_bounds = array<i64: 8, 64>}]} {
    %0 = tpu.iota {dimensions = array<i32: 0>} : vector<8x64xi32>
    %c8_i32 = arith.constant 8 : i32
    %1 = arith.muli %arg0, %c8_i32 : i32
    %2 = vector.broadcast %1 : i32 to vector<8x64xi32>
    %3 = arith.addi %0, %2 : vector<8x64xi32>
    %4 = arith.sitofp %3 : vector<8x64xi32> to vector<8x64xf32>
    %c0 = arith.constant 0 : index
    %c0_0 = arith.constant 0 : index
    %5 = vector.load %arg2[%c0, %c0_0] : memref<1x64xf32, #tpu.memory_space<vmem>>, vector<1x64xf32>
    %6 = vector.broadcast %5 : vector<1x64xf32> to vector<8x64xf32>
    %7 = arith.mulf %4, %6 : vector<8x64xf32>
    %c0_1 = arith.constant 0 : index
    %c0_2 = arith.constant 0 : index
    %8 = vector.load %arg3[%c0_1, %c0_2] : memref<1x64xf32, #tpu.memory_space<vmem>>, vector<1x64xf32>
    %9 = vector.broadcast %8 : vector<1x64xf32> to vector<8x64xf32>
    %10 = arith.addf %7, %9 : vector<8x64xf32>
    %11 = math.sin %10 : vector<8x64xf32>
    %c0_3 = arith.constant 0 : index
    %c0_4 = arith.constant 0 : index
    %12 = vector.load %arg1[%c0_3, %c0_4] : memref<8x64xf32, #tpu.memory_space<vmem>>, vector<8x64xf32>
    %13 = arith.addf %12, %11 : vector<8x64xf32>
    %c0_5 = arith.constant 0 : index
    %c0_6 = arith.constant 0 : index
    %14 = vector.load %arg4[%c0_5, %c0_6] : memref<8x64xf32, #tpu.memory_space<vmem>>, vector<8x64xf32>
    tpu.vector_store %arg4[%c0_5, %c0_6], %13 {strides = array<i32>} : memref<8x64xf32, #tpu.memory_space<vmem>>, vector<8x64xf32>,
    return
  }
  func.func @transform_0(%arg0: i32) -> (i32, i32) {
    %c0_i32 = arith.constant 0 : i32
    %c0_i32_0 = arith.constant 0 : i32
    return %arg0, %c0_i32 : i32, i32
  }
  func.func @transform_1(%arg0: i32) -> (i32, i32) {
    %c0_i32 = arith.constant 0 : i32
    %c0_i32_0 = arith.constant 0 : i32
    %c0_i32_1 = arith.constant 0 : i32
    return %c0_i32, %c0_i32_0 : i32, i32
  }
  func.func @transform_2(%arg0: i32) -> (i32, i32) {
    %c0_i32 = arith.constant 0 : i32
    %c0_i32_0 = arith.constant 0 : i32
    %c0_i32_1 = arith.constant 0 : i32
    return %c0_i32, %c0_i32_0 : i32, i32
  }
  func.func @transform_3(%arg0: i32) -> (i32, i32) {
    %c0_i32 = arith.constant 0 : i32
    %c0_i32_0 = arith.constant 0 : i32
    return %arg0, %c0_i32 : i32, i32
  }
}

</mosaic_0001>

<llo_original>
// kernel: tpu_custom_call.1
$region0: #{tpu_custom_call.1}
  #allocation0 [shape = 'u32[]', space=smem, size = 0x4, offset = 0x4, fixed_abs, tag = 'smem constant byte address 0x4 - core index']
  #allocation1 [shape = 'u32[144,128]{1,0:T(1,128)}', space=vmem, size = 0x12000, scoped, tag = 'internal scratch']
  %s0 = inlined_call_operand.hbm [shape: f32[8,64], index: 0, kind: input, shape index: {}]
  %s1 = inlined_call_operand.vmem [shape: f32[1,64], index: 1, kind: input, shape index: {}]
  %s2 = inlined_call_operand.vmem [shape: f32[1,64], index: 2, kind: input, shape index: {}]
  %s3 = inlined_call_operand.hbm [shape: f32[8,64], index: 3, kind: output, shape index: {}]
  %s4 = sld [smem:[#allocation0]]
  $region26: #{tpu_custom_call.1} parent=0
    _
  %s6 = ssub.s32 1, %s4
  %s7 = scalar_select 0, %s6, %s4
  $region1: #{tpu_custom_call.1} parent=0
    #allocation2 [shape = 'u8[4096]{0}', space=vmem, size = 0x1000, scoped, tag = 'input window, operand 0, single buffered']
    #allocation3 [shape = 's32[1]{0}', space=sflag, size = 0x4, scoped, tag = 'scoped memory for tpu_custom_call.1']
    #allocation4 [shape = 's32[1]{0}', space=sflag, size = 0x4, scoped, tag = 'scoped memory for tpu_custom_call.1']
    #allocation5 [shape = 'u8[4096]{0}', space=vmem, size = 0x1000, scoped, tag = 'output window, operand 0, single buffered']
    %8 = vsyncpa [#allocation3], 0
    %9 = vsyncpa [#allocation4], 0
    // Predicated region
    $region2: #{tpu_custom_call.1} parent=1 // pred_check
      _
    $region3: #{tpu_custom_call.1} parent=1 // pred_check_branch
      %11 = sbr.rel (0) target = $region5
    $region4: #{tpu_custom_call.1} parent=1 // pred_region
      %s13 = ssub.s32 128, 128
      %14 = vsyncadd [#allocation3], %s13
      %s16 = sshll.u32 [#allocation2], 4
      %s17 = int_to_ptr.vmem [resolvable:$true] %s16
      %19 = dma.hbm_to_vmem [thread:$0]  %s0, 128, %s17, [#allocation3]
    $region5: #{tpu_custom_call.1} parent=1 // pred_fallthru
      _
    // Predicated region
    $region6: #{tpu_custom_call.1} parent=1 // pred_check
      _
    $region7: #{tpu_custom_call.1} parent=1 // pred_check_branch
      %21 = sbr.rel (0) target = $region9
    $region8: #{tpu_custom_call.1} parent=1 // pred_region
      _
    $region9: #{tpu_custom_call.1} parent=1 // pred_fallthru
      _
    // Predicated region
    $region10: #{tpu_custom_call.1} parent=1 // pred_check
      _
    $region11: #{tpu_custom_call.1} parent=1 // pred_check_branch
      %23 = sbr.rel (0) target = $region13
    $region12: #{tpu_custom_call.1} parent=1 // pred_region
      _
    $region13: #{tpu_custom_call.1} parent=1 // pred_fallthru
      _
    // Predicated region
    $region14: #{tpu_custom_call.1} parent=1 // pred_check
      _
    $region15: #{tpu_custom_call.1} parent=1 // pred_check_branch
      %25 = sbr.rel (0) target = $region17
    $region16: #{tpu_custom_call.1} parent=1 // pred_region
      %26 = dma.done [#allocation3], 128
    $region17: #{tpu_custom_call.1} parent=1 // pred_fallthru
      _
    %v27 = vlaneseq
    %v28 = vshrl.u32 %v27, 7
    %s29 = smul.u32 0, 8
    %v30 = vstv %s29
    %v31 = vadd.s32 %v28, %v30
    %v32 = vcvt.s32.f32 %v31
    %v33 = vld [vmem:[%s1] sm:$0x1]
    %v35 = vlaneseq
    %v36 = vshrl.u32 %v35, 7
    %v37 = vsub.s32 0, %v36
    %v38 = vrot.slane %v33, %v37
    %v40 = vmul.f32 %v32, %v38
    %v41 = vld [vmem:[%s2] sm:$0x1]
    %v43 = vlaneseq
    %v44 = vshrl.u32 %v43, 7
    %v45 = vsub.s32 0, %v44
    %v46 = vrot.slane %v41, %v45
    %v48 = vadd.f32 %v40, %v46
    %v49 = vand.u32 2147483647, %v48
    %vm50 = vcmp.le.f32.partialorder %v49, 0.7853982
    %vm51 = vcmp.lt.s32.totalorder %v48, 0
    %v52 = vand.u32 %v48, 2139095040
    %v53 = vshrl.u32 %v52, 23
    %v54 = vsub.s32 %v53, 127
    %v55 = vand.u32 2147483647, %v48
    %v56 = vand.u32 %v55, 8388607
    %v57 = vor.u32 %v56, 8388608
    %v58 = vsub.s32 0, %v57
    %v59 = vadd.s32 %v54, 1
    %vm60 = vcmp.gt.s32.totalorder %v59, 0
    %v61 = vsel %vm60, %v59, 0
    %v62 = vshrl.u32 %v61, 5
    %v63 = vand.u32 %v61, 31
    %v64 = vsub.s32 32, %v63
    %v65 = vshrl.u32 683565275, %v64
    %v66 = vshll.u32 683565275, %v63
    %v67 = vshrl.u32 2475754826, %v64
    %v68 = vor.u32 %v66, %v67
    %v69 = vshll.u32 2475754826, %v63
    %v70 = vshrl.u32 2131351028, %v64
    %v71 = vor.u32 %v69, %v70
    %v72 = vshll.u32 2131351028, %v63
    %v73 = vshrl.u32 2102212464, %v64
    %v74 = vor.u32 %v72, %v73
    %v75 = vshll.u32 2102212464, %v63
    %v76 = vshrl.u32 920167782, %v64
    %v77 = vor.u32 %v75, %v76
    %v78 = vshll.u32 920167782, %v63
    %v79 = vshrl.u32 1326507024, %v64
    %v80 = vor.u32 %v78, %v79
    %vm81 = vcmp.lt.s32.totalorder %v62, 1
    %vm82 = vcmp.lt.s32.totalorder %v62, 2
    %vm83 = vcmp.lt.s32.totalorder %v62, 3
    %vm84 = vcmp.lt.s32.totalorder %v62, 4
    %v85 = vsel %vm81, %v65, %v68
    %v86 = vsel %vm84, %v74, 2102212464
    %v87 = vsel %vm83, %v71, %v86
    %v88 = vsel %vm82, %v85, %v87
    %v89 = vsel %vm81, %v68, %v71
    %v90 = vsel %vm84, %v77, 920167782
    %v91 = vsel %vm83, %v74, %v90
    %v92 = vsel %vm82, %v89, %v91
    %v93 = vsel %vm81, %v71, %v74
    %v94 = vsel %vm84, %v80, 1326507024
    %v95 = vsel %vm83, %v77, %v94
    %v96 = vsel %vm82, %v93, %v95
    %v97 = vshll.u32 %v57, 8
    %v98 = vmul.u32.u64.compose %v97, %v96
    %v99 = vextract.low.u32 %v98
    %v100 = vextract.high.u32 %v98
    %v101 = vmul.u32.u64.compose %v97, %v92
    %v102 = vextract.low.u32 %v101
    %v103 = vextract.high.u32 %v101
    %v104 = vmul.u32 %v97, %v88
    %v105 = vadd.s32 %v100, %v102
    %vm106 = vc.u32 %v100, %v102
    %v107 = vadd.s32 %v103, 1
    %v108 = vsel %vm106, %v107, %v103
    %v109 = vadd.s32 %v104, %v108
    %v110 = vadd.s32 %v109, 536870912
    %v111 = vshrl.u32 %v110, 30
    %v112 = vshll.u32 %v111, 30
    %v113 = vsub.s32 %v109, %v112
    %vm114 = vcmp.lt.s32.totalorder %v113, 0
    %v115 = vsub.s32 0, %v113
    %v116 = vsel %vm114, %v115, %v113
    %v117 = vclz %v116
    %v118 = vsub.s32 %v117, 2
    %vm119 = vcmp.gt.s32.totalorder 0, %v118
    %v120 = vsel %vm119, 0, %v118
    %v121 = vsub.s32 32, %v120
    %v122 = vshll.u32 %v113, %v120
    %v123 = vshrl.u32 %v105, %v121
    %v124 = vor.u32 %v122, %v123
    %v125 = vsub.s32 4294967266, %v120
    %v126 = vadd.s32 %v125, 127
    %v127 = vshll.u32 %v126, 23
    %v128 = vor.u32 4788187, %v127
    %v129 = vand.u32 2147483647, %v128
    %v131 = vcvt.s32.f32 %v124
    %v132 = vmul.f32 %v131, %v129
    %v133 = vxor.u32 %v132, 2147483648
    %v134 = vsel %vm51, %v133, %v132
    %v135 = vsub.s32 4, %v111
    %v136 = vsel %vm51, %v135, %v111
    %v137 = vsel %vm50, %v48, %v134
    %v138 = vsel %vm50, 0, %v136
    %v139 = vcosq.f32.pop %v137
    %v140 = vsinq.f32.pop %v137
    %vm141 = vweird.f32 %v48
    %v142 = vadd.s32 %v138, 3
    %v143 = vand.u32 %v142, 3
    %vm144 = vcmp.lt.s32.totalorder %v143, 2
    %vm145 = vcmp.eq.s32.totalorder %v143, 0
    %v146 = vxor.u32 %v140, 2147483648
    %v147 = vsel %vm145, %v139, %v146
    %vm148 = vcmp.eq.s32.totalorder %v143, 2
    %v149 = vxor.u32 %v139, 2147483648
    %v150 = vsel %vm148, %v149, %v140
    %v151 = vsel %vm144, %v147, %v150
    %v152 = vsel %vm141, nan, %v151
    %v153 = vld [vmem:[#allocation2] sm:$0xff]
    %v154 = vadd.f32 %v153, %v152
    %vm155 = vcmask 523264
    %156 = vst.msk [vmem:[#allocation5] sm:$0xff] %vm155, %v154
    // Predicated region
    $region18: #{tpu_custom_call.1} parent=1 // pred_check
      _
    $region19: #{tpu_custom_call.1} parent=1 // pred_check_branch
      %158 = sbr.rel (0) target = $region21
    $region20: #{tpu_custom_call.1} parent=1 // pred_region
      %s160 = ssub.s32 128, 128
      %161 = vsyncadd [#allocation4], %s160
      %s163 = sshll.u32 [#allocation5], 4
      %s164 = int_to_ptr.vmem [resolvable:$true] %s163
      %166 = dma.vmem_to_hbm [thread:$0]  %s164, 128, %s3, [#allocation4]
    $region21: #{tpu_custom_call.1} parent=1 // pred_fallthru
      _
    // Predicated region
    $region22: #{tpu_custom_call.1} parent=1 // pred_check
      _
    $region23: #{tpu_custom_call.1} parent=1 // pred_check_branch
      %168 = sbr.rel (0) target = $region25
    $region24: #{tpu_custom_call.1} parent=1 // pred_region
      %169 = dma.done [#allocation4], 128
    $region25: #{tpu_custom_call.1} parent=1 // pred_fallthru
      _
    %170 = vsyncpa [#allocation3], 1
    %171 = vsyncpa [#allocation4], 1

</llo_original>
